<compile_context>
chip_gen: v5e
topology: v5e:2x2
jax: 0.10.0
libtpu: 0.0.40
codegen_flags: <defaults>
</compile_context>

<pallas_src>
import jax
import jax.numpy as jnp
from jax.experimental import pallas as pl
from jax.experimental.pallas import tpu as pltpu

EPS = 1e-5


def _round_up(n, m):
    return ((n + m - 1) // m) * m


def _layernorm(x, gamma, beta):
    # One-pass statistics in f32: E[x^2] - E[x]^2 (half the XLU reduction
    # traffic of the two-pass form).
    mean = jnp.mean(x, axis=-1, keepdims=True)
    mean_sq = jnp.mean(x * x, axis=-1, keepdims=True)
    var = jnp.maximum(mean_sq - mean * mean, 0.0)
    return (x - mean) * jax.lax.rsqrt(var + EPS) * gamma + beta


def sandwich_kernel(x_ref, g1_ref, b1_ref, w_ref, bw_ref, g2_ref, b2_ref, o_ref):
    # x_ref: (TM, D) tile of tokens; params broadcast across row tiles.
    x = x_ref[...].astype(jnp.float32)

    # --- prenorm (LayerNorm over D, f32 statistics) ---
    xn = _layernorm(x, g1_ref[...].astype(jnp.float32),
                    b1_ref[...].astype(jnp.float32))

    # --- fn: Linear(D, D) + GELU ---
    # Matmul in the weight's native dtype (bf16 fast path on the MXU when the
    # caller stores W in bf16); f32 accumulation. W itself is never cast in
    # the kernel, so no per-iteration D^2 VPU cast.
    w = w_ref[...]
    h = jnp.dot(xn.astype(w.dtype), w, preferred_element_type=jnp.float32)
    h = h + bw_ref[...].astype(jnp.float32)
    h = jax.nn.gelu(h, approximate=True)   # tanh form -> EUP slot

    # --- postnorm (LayerNorm over D) ---
    y = _layernorm(h, g2_ref[...].astype(jnp.float32),
                   b2_ref[...].astype(jnp.float32))

    # --- dropout: eval-mode identity ---
    # TODO(synk): training-mode dropout (nn.Dropout(p>0)) would need
    # pltpu.prng_seed + pltpu.stateful_bernoulli; eval forward is identity.
    o_ref[...] = y.astype(o_ref.dtype)


def sandwich_norm(x, params, *, block_rows=256):
    """x: [B, S, D] -> [B, S, D].  block_rows is the primary tuning knob."""
    B, S, D = x.shape
    N = B * S
    g1, b1, w, bw, g2, b2 = params

    # Row-tile sizing: multiple of 8 (sublanes), capped by the (padded) number
    # of rows so tiny problems don't over-pad.
    bm = _round_up(min(block_rows, _round_up(N, 8)), 8)
    Np = _round_up(N, bm)

    x2 = x.reshape(N, D)
    if Np != N:
        # Pad the tail tile instead of forcing tiny block_rows. Padded rows are
        # zeros; LayerNorm of a zero row is finite (eps > 0), results discarded.
        x2 = jnp.pad(x2, ((0, Np - N), (0, 0)))

    row_spec = pl.BlockSpec((bm, D), lambda i: (i, 0))
    vec_spec = pl.BlockSpec((1, D), lambda i: (0, 0))
    # TODO(synk): for very large D (>=4k on v7x), K/N-tile the weight with
    # pltpu.emit_pipeline + memory_space=pl.ANY instead of keeping it resident.
    mat_spec = pl.BlockSpec((D, D), lambda i: (0, 0))

    itm_x = jnp.dtype(x.dtype).itemsize
    itm_w = jnp.dtype(w.dtype).itemsize
    # Working set: double-buffered input & output row tiles, double-buffered
    # weight (default pipelining), param vectors; 1.5x headroom for internal
    # f32 temporaries, floored at the 32 MiB scoped default.
    need = (2 * bm * D * itm_x) * 2 + 2 * D * D * itm_w + 2 * 5 * D * 4
    vmem_limit = int(min(max(need * 3 // 2, 32 * 1024 * 1024),
                         100 * 1024 * 1024))

    cost = pl.CostEstimate(
        flops=2 * Np * D * D + 10 * Np * D,
        transcendentals=Np * D,
        bytes_accessed=2 * Np * D * itm_x + D * D * itm_w + 5 * D * 4,
    )

    out = pl.pallas_call(
        sandwich_kernel,
        out_shape=jax.ShapeDtypeStruct((Np, D), x.dtype),
        grid_spec=pltpu.PrefetchScalarGridSpec(
            num_scalar_prefetch=0,
            grid=(Np // bm,),
            in_specs=[row_spec, vec_spec, vec_spec, mat_spec, vec_spec,
                      vec_spec, vec_spec],
            out_specs=row_spec,
        ),
        compiler_params=pltpu.CompilerParams(
            dimension_semantics=("parallel",),
            vmem_limit_bytes=vmem_limit,
        ),
        cost_estimate=cost,
    )(x2, g1, b1, w, bw, g2, b2)

    return out[:N].reshape(B, S, D)


def make_params(key, dim, *, w_dtype=jnp.float32):
    k_w, k_bw = jax.random.split(key)
    # LayerNorm affine params kept in f32 (they are tiny (1, D) vectors).
    g1 = jnp.ones((1, dim), jnp.float32)
    b1 = jnp.zeros((1, dim), jnp.float32)
    g2 = jnp.ones((1, dim), jnp.float32) * 1.1
    b2 = jnp.full((1, dim), 0.05, jnp.float32)
    # Linear(dim, dim): weight stored as (D_in, D_out) so the kernel does x @ W.
    w = (jax.random.normal(k_w, (dim, dim), jnp.float32)
         * (1.0 / dim ** 0.5)).astype(w_dtype)
    bw = (jax.random.normal(k_bw, (1, dim), jnp.float32) * 0.02).astype(w_dtype)
    return (g1, b1, w, bw, g2, b2)


def reference(x, params):
    """Pure-JAX reference with the same numerics (one-pass LN, dtype-matched dot)."""
    g1, b1, w, bw, g2, b2 = params
    D = x.shape[-1]
    xf = x.astype(jnp.float32).reshape(-1, D)
    xn = _layernorm(xf, g1.astype(jnp.float32), b1.astype(jnp.float32))
    h = jnp.dot(xn.astype(w.dtype), w, preferred_element_type=jnp.float32)
    h = h + bw.astype(jnp.float32)
    h = jax.nn.gelu(h, approximate=True)
    y = _layernorm(h, g2.astype(jnp.float32), b2.astype(jnp.float32))
    return y.reshape(x.shape).astype(x.dtype)


if __name__ == "__main__":
    key = jax.random.PRNGKey(0)
    k_x, k_p = jax.random.split(key)

    # Small but realistic: full 128-lane hidden dim, 16 tokens (exercises the
    # padded-tail path since 16 < block_rows default).
    B, S, D = 2, 8, 128
    x = jax.random.normal(k_x, (B, S, D), jnp.float32)

    # --- f32 weight path ---
    params_f32 = make_params(k_p, D, w_dtype=jnp.float32)
    out = jax.block_until_ready(sandwich_norm(x, params_f32))
    ref = reference(x, params_f32)
    assert out.shape == (B, S, D)
    assert jnp.allclose(out, ref, atol=1e-4, rtol=1e-4), "f32 mismatch vs reference"

    # --- bf16 weight path (MXU fast path), looser tolerance ---
    params_bf16 = make_params(k_p, D, w_dtype=jnp.bfloat16)
    out16 = jax.block_until_ready(sandwich_norm(x, params_bf16))
    ref16 = reference(x, params_bf16)
    assert jnp.allclose(out16, ref16, atol=2e-2, rtol=2e-2), "bf16 mismatch vs reference"

    print("KERNEL_OK")
</pallas_src>

<mosaic_0001>
module attributes {stable_mosaic.version = 11 : i64} {
  func.func @sandwich_kernel(%arg0: i32, %arg1: memref<16x128xf32, #tpu.memory_space<vmem>>, %arg2: memref<1x128xf32, #tpu.memory_space<vmem>>, %arg3: memref<1x128xf32, #tpu.memory_space<vmem>>, %arg4: memref<128x128xf32, #tpu.memory_space<vmem>>, %arg5: memref<1x128xf32, #tpu.memory_space<vmem>>, %arg6: memref<1x128xf32, #tpu.memory_space<vmem>>, %arg7: memref<1x128xf32, #tpu.memory_space<vmem>>, %arg8: memref<16x128xf32, #tpu.memory_space<vmem>>) attributes {dimension_semantics = [#tpu.dimension_semantics<parallel>], iteration_bounds = array<i64: 1>, scalar_prefetch = 0 : i64, scratch_operands = 0 : i64, tpu.core_type = #tpu.core_type<tc>, window_params = [{transform_indices = @transform_0, window_bounds = array<i64: 16, 128>}, {pipeline_mode = #tpu.pipeline_mode<synchronous>, transform_indices = @transform_1, window_bounds = array<i64: 1, 128>}, {pipeline_mode = #tpu.pipeline_mode<synchronous>, transform_indices = @transform_2, window_bounds = array<i64: 1, 128>}, {pipeline_mode = #tpu.pipeline_mode<synchronous>, transform_indices = @transform_3, window_bounds = array<i64: 128, 128>}, {pipeline_mode = #tpu.pipeline_mode<synchronous>, transform_indices = @transform_4, window_bounds = array<i64: 1, 128>}, {pipeline_mode = #tpu.pipeline_mode<synchronous>, transform_indices = @transform_5, window_bounds = array<i64: 1, 128>}, {pipeline_mode = #tpu.pipeline_mode<synchronous>, transform_indices = @transform_6, window_bounds = array<i64: 1, 128>}, {transform_indices = @transform_7, window_bounds = array<i64: 16, 128>}]} {
    %c0 = arith.constant 0 : index
    %c0_0 = arith.constant 0 : index
    %0 = vector.load %arg1[%c0, %c0_0] : memref<16x128xf32, #tpu.memory_space<vmem>>, vector<16x128xf32>
    %c0_1 = arith.constant 0 : index
    %c0_2 = arith.constant 0 : index
    %1 = vector.load %arg2[%c0_1, %c0_2] : memref<1x128xf32, #tpu.memory_space<vmem>>, vector<1x128xf32>
    %c0_3 = arith.constant 0 : index
    %c0_4 = arith.constant 0 : index
    %2 = vector.load %arg3[%c0_3, %c0_4] : memref<1x128xf32, #tpu.memory_space<vmem>>, vector<1x128xf32>
    %cst = arith.constant dense<0.000000e+00> : vector<16xf32>
    %3 = vector.multi_reduction <add>, %0, %cst [1] : vector<16x128xf32> to vector<16xf32>
    %4 = vector.shape_cast %3 : vector<16xf32> to vector<16x1xf32>
    %cst_5 = arith.constant 1.280000e+02 : f32
    %5 = vector.broadcast %cst_5 : f32 to vector<16x1xf32>
    %6 = arith.divf %4, %5 : vector<16x1xf32>
    %7 = arith.mulf %0, %0 : vector<16x128xf32>
    %cst_6 = arith.constant dense<0.000000e+00> : vector<16xf32>
    %8 = vector.multi_reduction <add>, %7, %cst_6 [1] : vector<16x128xf32> to vector<16xf32>
    %9 = vector.shape_cast %8 : vector<16xf32> to vector<16x1xf32>
    %cst_7 = arith.constant 1.280000e+02 : f32
    %10 = vector.broadcast %cst_7 : f32 to vector<16x1xf32>
    %11 = arith.divf %9, %10 : vector<16x1xf32>
    %12 = arith.mulf %6, %6 : vector<16x1xf32>
    %13 = arith.subf %11, %12 : vector<16x1xf32>
    %cst_8 = arith.constant 0.000000e+00 : f32
    %14 = vector.broadcast %cst_8 : f32 to vector<16x1xf32>
    %15 = arith.maximumf %13, %14 : vector<16x1xf32>
    %16 = vector.broadcast %6 : vector<16x1xf32> to vector<16x128xf32>
    %17 = arith.subf %0, %16 : vector<16x128xf32>
    %cst_9 = arith.constant 9.99999974E-6 : f32
    %18 = vector.broadcast %cst_9 : f32 to vector<16x1xf32>
    %19 = arith.addf %15, %18 : vector<16x1xf32>
    %20 = math.rsqrt %19 : vector<16x1xf32>
    %21 = vector.broadcast %20 : vector<16x1xf32> to vector<16x128xf32>
    %22 = arith.mulf %17, %21 : vector<16x128xf32>
    %23 = vector.broadcast %1 : vector<1x128xf32> to vector<16x128xf32>
    %24 = arith.mulf %22, %23 : vector<16x128xf32>
    %25 = vector.broadcast %2 : vector<1x128xf32> to vector<16x128xf32>
    %26 = arith.addf %24, %25 : vector<16x128xf32>
    %c0_10 = arith.constant 0 : index
    %c0_11 = arith.constant 0 : index
    %27 = vector.load %arg4[%c0_10, %c0_11] : memref<128x128xf32, #tpu.memory_space<vmem>>, vector<128x128xf32>
    %cst_12 = arith.constant dense<0.000000e+00> : vector<16x128xf32>
    %28 = tpu.matmul %26, %27, %cst_12 {dimension_numbers = #tpu.dot_dimension_numbers<[1], [0], [0], [1], [0, 0, 1, 1], [], []>} : vector<16x128xf32>, vector<128x128xf32>, vector<16x128xf32> -> vector<16x128xf32>
    %c0_13 = arith.constant 0 : index
    %c0_14 = arith.constant 0 : index
    %29 = vector.load %arg5[%c0_13, %c0_14] : memref<1x128xf32, #tpu.memory_space<vmem>>, vector<1x128xf32>
    %30 = vector.broadcast %29 : vector<1x128xf32> to vector<16x128xf32>
    %31 = arith.addf %28, %30 : vector<16x128xf32>
    %32 = arith.mulf %31, %31 : vector<16x128xf32>
    %33 = arith.mulf %31, %32 : vector<16x128xf32>
    %cst_15 = arith.constant 4.471500e-02 : f32
    %34 = vector.broadcast %cst_15 : f32 to vector<16x128xf32>
    %35 = arith.mulf %34, %33 : vector<16x128xf32>
    %36 = arith.addf %31, %35 : vector<16x128xf32>
    %cst_16 = arith.constant 0.797884583 : f32
    %37 = vector.broadcast %cst_16 : f32 to vector<16x128xf32>
    %38 = arith.mulf %37, %36 : vector<16x128xf32>
    %39 = math.tanh %38 : vector<16x128xf32>
    %cst_17 = arith.constant 1.000000e+00 : f32
    %40 = vector.broadcast %cst_17 : f32 to vector<16x128xf32>
    %41 = arith.addf %40, %39 : vector<16x128xf32>
    %cst_18 = arith.constant 5.000000e-01 : f32
    %42 = vector.broadcast %cst_18 : f32 to vector<16x128xf32>
    %43 = arith.mulf %42, %41 : vector<16x128xf32>
    %44 = arith.mulf %31, %43 : vector<16x128xf32>
    %c0_19 = arith.constant 0 : index
    %c0_20 = arith.constant 0 : index
    %45 = vector.load %arg6[%c0_19, %c0_20] : memref<1x128xf32, #tpu.memory_space<vmem>>, vector<1x128xf32>
    %c0_21 = arith.constant 0 : index
    %c0_22 = arith.constant 0 : index
    %46 = vector.load %arg7[%c0_21, %c0_22] : memref<1x128xf32, #tpu.memory_space<vmem>>, vector<1x128xf32>
    %cst_23 = arith.constant dense<0.000000e+00> : vector<16xf32>
    %47 = vector.multi_reduction <add>, %44, %cst_23 [1] : vector<16x128xf32> to vector<16xf32>
    %48 = vector.shape_cast %47 : vector<16xf32> to vector<16x1xf32>
    %cst_24 = arith.constant 1.280000e+02 : f32
    %49 = vector.broadcast %cst_24 : f32 to vector<16x1xf32>
    %50 = arith.divf %48, %49 : vector<16x1xf32>
    %51 = arith.mulf %44, %44 : vector<16x128xf32>
    %cst_25 = arith.constant dense<0.000000e+00> : vector<16xf32>
    %52 = vector.multi_reduction <add>, %51, %cst_25 [1] : vector<16x128xf32> to vector<16xf32>
    %53 = vector.shape_cast %52 : vector<16xf32> to vector<16x1xf32>
    %cst_26 = arith.constant 1.280000e+02 : f32
    %54 = vector.broadcast %cst_26 : f32 to vector<16x1xf32>
    %55 = arith.divf %53, %54 : vector<16x1xf32>
    %56 = arith.mulf %50, %50 : vector<16x1xf32>
    %57 = arith.subf %55, %56 : vector<16x1xf32>
    %cst_27 = arith.constant 0.000000e+00 : f32
    %58 = vector.broadcast %cst_27 : f32 to vector<16x1xf32>
    %59 = arith.maximumf %57, %58 : vector<16x1xf32>
    %60 = vector.broadcast %50 : vector<16x1xf32> to vector<16x128xf32>
    %61 = arith.subf %44, %60 : vector<16x128xf32>
    %cst_28 = arith.constant 9.99999974E-6 : f32
    %62 = vector.broadcast %cst_28 : f32 to vector<16x1xf32>
    %63 = arith.addf %59, %62 : vector<16x1xf32>
    %64 = math.rsqrt %63 : vector<16x1xf32>
    %65 = vector.broadcast %64 : vector<16x1xf32> to vector<16x128xf32>
    %66 = arith.mulf %61, %65 : vector<16x128xf32>
    %67 = vector.broadcast %45 : vector<1x128xf32> to vector<16x128xf32>
    %68 = arith.mulf %66, %67 : vector<16x128xf32>
    %69 = vector.broadcast %46 : vector<1x128xf32> to vector<16x128xf32>
    %70 = arith.addf %68, %69 : vector<16x128xf32>
    %c0_29 = arith.constant 0 : index
    %c0_30 = arith.constant 0 : index
    %71 = vector.load %arg8[%c0_29, %c0_30] : memref<16x128xf32, #tpu.memory_space<vmem>>, vector<16x128xf32>
    tpu.vector_store %arg8[%c0_29, %c0_30], %70 {strides = array<i32>} : memref<16x128xf32, #tpu.memory_space<vmem>>, vector<16x128xf32>,
    return
  }
  func.func @transform_0(%arg0: i32) -> (i32, i32) {
    %c0_i32 = arith.constant 0 : i32
    %c0_i32_0 = arith.constant 0 : i32
    return %arg0, %c0_i32 : i32, i32
  }
  func.func @transform_1(%arg0: i32) -> (i32, i32) {
    %c0_i32 = arith.constant 0 : i32
    %c0_i32_0 = arith.constant 0 : i32
    %c0_i32_1 = arith.constant 0 : i32
    return %c0_i32, %c0_i32_0 : i32, i32
  }
  func.func @transform_2(%arg0: i32) -> (i32, i32) {
    %c0_i32 = arith.constant 0 : i32
    %c0_i32_0 = arith.constant 0 : i32
    %c0_i32_1 = arith.constant 0 : i32
    return %c0_i32, %c0_i32_0 : i32, i32
  }
  func.func @transform_3(%arg0: i32) -> (i32, i32) {
    %c0_i32 = arith.constant 0 : i32
    %c0_i32_0 = arith.constant 0 : i32
    %c0_i32_1 = arith.constant 0 : i32
    return %c0_i32, %c0_i32_0 : i32, i32
  }
  func.func @transform_4(%arg0: i32) -> (i32, i32) {
    %c0_i32 = arith.constant 0 : i32
    %c0_i32_0 = arith.constant 0 : i32
    %c0_i32_1 = arith.constant 0 : i32
    return %c0_i32, %c0_i32_0 : i32, i32
  }
  func.func @transform_5(%arg0: i32) -> (i32, i32) {
    %c0_i32 = arith.constant 0 : i32
    %c0_i32_0 = arith.constant 0 : i32
    %c0_i32_1 = arith.constant 0 : i32
    return %c0_i32, %c0_i32_0 : i32, i32
  }
  func.func @transform_6(%arg0: i32) -> (i32, i32) {
    %c0_i32 = arith.constant 0 : i32
    %c0_i32_0 = arith.constant 0 : i32
    %c0_i32_1 = arith.constant 0 : i32
    return %c0_i32, %c0_i32_0 : i32, i32
  }
  func.func @transform_7(%arg0: i32) -> (i32, i32) {
    %c0_i32 = arith.constant 0 : i32
    %c0_i32_0 = arith.constant 0 : i32
    return %arg0, %c0_i32 : i32, i32
  }
}

</mosaic_0001>

<llo_original>
// kernel: tpu_custom_call.1
$region0: #{tpu_custom_call.1}
  #allocation0 [shape = 'u32[]', space=smem, size = 0x4, offset = 0x4, fixed_abs, tag = 'smem constant byte address 0x4 - core index']
  #allocation1 [shape = 'u32[72,128]{1,0:T(1,128)}', space=vmem, size = 0x9000, scoped, tag = 'internal scratch']
  %s0 = inlined_call_operand.hbm [shape: f32[16,128], index: 0, kind: input, shape index: {}]
  %s1 = inlined_call_operand.hbm [shape: f32[1,128], index: 1, kind: input, shape index: {}]
  %s2 = inlined_call_operand.vmem [shape: f32[1,128], index: 2, kind: input, shape index: {}]
  %s3 = inlined_call_operand.hbm [shape: f32[128,128], index: 3, kind: input, shape index: {}]
  %s4 = inlined_call_operand.vmem [shape: f32[1,128], index: 4, kind: input, shape index: {}]
  %s5 = inlined_call_operand.vmem [shape: f32[1,128], index: 5, kind: input, shape index: {}]
  %s6 = inlined_call_operand.vmem [shape: f32[1,128], index: 6, kind: input, shape index: {}]
  %s7 = inlined_call_operand.hbm [shape: f32[16,128], index: 7, kind: output, shape index: {}]
  %s8 = sld [smem:[#allocation0]]
  $region50: #{tpu_custom_call.1} parent=0
    _
  %s10 = ssub.s32 1, %s8
  %s11 = scalar_select 0, %s10, %s8
  $region1: #{tpu_custom_call.1} parent=0
    #allocation2 [shape = 'u8[8192]{0}', space=vmem, size = 0x2000, scoped, tag = 'input window, operand 0, single buffered']
    #allocation3 [shape = 's32[1]{0}', space=sflag, size = 0x4, scoped, tag = 'scoped memory for tpu_custom_call.1']
    #allocation4 [shape = 's32[1]{0}', space=sflag, size = 0x4, scoped, tag = 'scoped memory for tpu_custom_call.1']
    #allocation5 [shape = 'u8[512]{0}', space=vmem, size = 0x400, scoped, tag = 'input window, operand 1, single buffered']
    #allocation6 [shape = 's32[1]{0}', space=sflag, size = 0x4, scoped, tag = 'scoped memory for tpu_custom_call.1']
    #allocation7 [shape = 'u8[65536]{0}', space=vmem, size = 0x10000, scoped, tag = 'input window, operand 3, single buffered']
    #allocation8 [shape = 'u8[8192]{0}', space=vmem, size = 0x2000, scoped, tag = 'output window, operand 0, single buffered']
    %12 = vsyncpa [#allocation3], 0
    %13 = vsyncpa [#allocation6], 0
    %14 = vsyncpa [#allocation4], 0
    // Predicated region
    $region2: #{tpu_custom_call.1} parent=1 // pred_check
      _
    $region3: #{tpu_custom_call.1} parent=1 // pred_check_branch
      %16 = sbr.rel (0) target = $region5
    $region4: #{tpu_custom_call.1} parent=1 // pred_region
      %18 = vsyncadd [#allocation3], 0
      %s19 = sshll.u32 %s0, 4
      %s20 = int_to_ptr.hbm [resolvable:$true] %s19
      %s21 = sshll.u32 [#allocation2], 4
      %s22 = int_to_ptr.vmem [resolvable:$true] %s21
      %27 = dma.hbm_to_vmem [thread:$0]  %s20, 256, %s22, [#allocation3], 128, 128, 8
    $region5: #{tpu_custom_call.1} parent=1 // pred_fallthru
      _
    // Predicated region
    $region6: #{tpu_custom_call.1} parent=1 // pred_check
      _
    $region7: #{tpu_custom_call.1} parent=1 // pred_check_branch
      %29 = sbr.rel (0) target = $region9
    $region8: #{tpu_custom_call.1} parent=1 // pred_region
      %31 = vsyncadd [#allocation6], 0
      %s33 = sshll.u32 %s1, 4
      %s34 = int_to_ptr.hbm [resolvable:$true] %s33
      %s35 = sshll.u32 [#allocation5], 4
      %s36 = int_to_ptr.vmem [resolvable:$true] %s35
      %38 = dma.hbm_to_vmem [thread:$0]  %s34, 16, %s36, [#allocation6]
    $region9: #{tpu_custom_call.1} parent=1 // pred_fallthru
      _
    // Predicated region
    $region10: #{tpu_custom_call.1} parent=1 // pred_check
      _
    $region11: #{tpu_custom_call.1} parent=1 // pred_check_branch
      %40 = sbr.rel (0) target = $region13
    $region12: #{tpu_custom_call.1} parent=1 // pred_region
      _
    $region13: #{tpu_custom_call.1} parent=1 // pred_fallthru
      _
    // Predicated region
    $region14: #{tpu_custom_call.1} parent=1 // pred_check
      _
    $region15: #{tpu_custom_call.1} parent=1 // pred_check_branch
      %42 = sbr.rel (0) target = $region17
    $region16: #{tpu_custom_call.1} parent=1 // pred_region
      %44 = vsyncadd [#allocation6], 0
      %s45 = sshll.u32 %s3, 4
      %s46 = int_to_ptr.hbm [resolvable:$true] %s45
      %s47 = sshll.u32 [#allocation7], 4
      %s48 = int_to_ptr.vmem [resolvable:$true] %s47
      %53 = dma.hbm_to_vmem [thread:$0]  %s46, 2048, %s48, [#allocation6], 128, 128, 8
    $region17: #{tpu_custom_call.1} parent=1 // pred_fallthru
      _
    // Predicated region
    $region18: #{tpu_custom_call.1} parent=1 // pred_check
      _
    $region19: #{tpu_custom_call.1} parent=1 // pred_check_branch
      %55 = sbr.rel (0) target = $region21
    $region20: #{tpu_custom_call.1} parent=1 // pred_region
      _
    $region21: #{tpu_custom_call.1} parent=1 // pred_fallthru
      _
    // Predicated region
    $region22: #{tpu_custom_call.1} parent=1 // pred_check
      _
    $region23: #{tpu_custom_call.1} parent=1 // pred_check_branch
      %57 = sbr.rel (0) target = $region25
    $region24: #{tpu_custom_call.1} parent=1 // pred_region
      _
    $region25: #{tpu_custom_call.1} parent=1 // pred_fallthru
      _
    // Predicated region
    $region26: #{tpu_custom_call.1} parent=1 // pred_check
      _
    $region27: #{tpu_custom_call.1} parent=1 // pred_check_branch
      %59 = sbr.rel (0) target = $region29
    $region28: #{tpu_custom_call.1} parent=1 // pred_region
      _
    $region29: #{tpu_custom_call.1} parent=1 // pred_fallthru
      _
    // Predicated region
    $region30: #{tpu_custom_call.1} parent=1 // pred_check
      _
    $region31: #{tpu_custom_call.1} parent=1 // pred_check_branch
      %61 = sbr.rel (0) target = $region33
    $region32: #{tpu_custom_call.1} parent=1 // pred_region
      %63 = dma.done [#allocation3], 256
    $region33: #{tpu_custom_call.1} parent=1 // pred_fallthru
      _
    // Predicated region
    $region34: #{tpu_custom_call.1} parent=1 // pred_check
      _
    $region35: #{tpu_custom_call.1} parent=1 // pred_check_branch
      %65 = sbr.rel (0) target = $region37
    $region36: #{tpu_custom_call.1} parent=1 // pred_region
      %67 = dma.done [#allocation6], 16
    $region37: #{tpu_custom_call.1} parent=1 // pred_fallthru
      _
    // Predicated region
    $region38: #{tpu_custom_call.1} parent=1 // pred_check
      _
    $region39: #{tpu_custom_call.1} parent=1 // pred_check_branch
      %69 = sbr.rel (0) target = $region41
    $region40: #{tpu_custom_call.1} parent=1 // pred_region
      %71 = dma.done [#allocation6], 2048
    $region41: #{tpu_custom_call.1} parent=1 // pred_fallthru
      _
    %v72 = vld [vmem:[#allocation2] sm:$0xff]
    %v73 = vld [vmem:[#allocation2 + $0x8] sm:$0xff]
    %v74 = vld [vmem:[#allocation5] sm:$0x1]
    %v75 = vld [vmem:[%s2] sm:$0x1]
    %76 = vadd.xlane.f32.xlu0 %v72
    %v77 = vpop.xlane.xlu0 %76
    %78 = vadd.xlane.f32.xlu0 %v73
    %v79 = vpop.xlane.xlu0 %78
    %v80 = vrcp.pop 128.0
    %v81 = vmul.f32 128.0, %v80
    %v82 = vsub.f32 1.0, %v81
    %v83 = vmul.f32 %v80, %v82
    %v84 = vadd.f32 %v80, %v83
    %vm85 = vweird.f32 %v80
    %v86 = vsel %vm85, %v80, %v84
    %v87 = vmul.f32 %v77, %v86
    %v88 = vmul.f32 %v79, %v86
    %v89 = vmul.f32 %v72, %v72
    %v90 = vmul.f32 %v73, %v73
    %91 = vadd.xlane.f32.xlu0 %v89
    %v92 = vpop.xlane.xlu0 %91
    %93 = vadd.xlane.f32.xlu0 %v90
    %v94 = vpop.xlane.xlu0 %93
    %v95 = vmul.f32 %v92, %v86
    %v96 = vmul.f32 %v94, %v86
    %v97 = vmul.f32 %v87, %v87
    %v98 = vmul.f32 %v88, %v88
    %v99 = vsub.f32 %v95, %v97
    %v100 = vsub.f32 %v96, %v98
    %v101 = vmax.f32 %v99, 0.0
    %v102 = vmax.f32 %v100, 0.0
    %v103 = vsub.f32 %v72, %v87
    %v104 = vsub.f32 %v73, %v88
    %v105 = vadd.f32 %v101, 1e-05
    %v106 = vadd.f32 %v102, 1e-05
    %v107 = vrsqrt.pop %v105
    %v108 = vmul.f32 %v107, %v105
    %v109 = vmul.f32 %v108, %v107
    %v110 = vmul.f32 0.5, %v109
    %v111 = vsub.f32 1.5, %v110
    %v112 = vmul.f32 %v107, %v111
    %vm113 = vweird.f32 %v105
    %vm114 = vweird.f32 %v107
    %vm115 = vmor %vm113, %vm114
    %v116 = vsel %vm115, %v107, %v112
    %v117 = vrsqrt.pop %v106
    %v118 = vmul.f32 %v117, %v106
    %v119 = vmul.f32 %v118, %v117
    %v120 = vmul.f32 0.5, %v119
    %v121 = vsub.f32 1.5, %v120
    %v122 = vmul.f32 %v117, %v121
    %vm123 = vweird.f32 %v106
    %vm124 = vweird.f32 %v117
    %vm125 = vmor %vm123, %vm124
    %v126 = vsel %vm125, %v117, %v122
    %v127 = vmul.f32 %v103, %v116
    %v128 = vmul.f32 %v104, %v126
    %v130 = vperm.slane %v74, 0
    %v132 = vmul.f32 %v127, %v130
    %v133 = vmul.f32 %v128, %v130
    %v135 = vperm.slane %v75, 0
    %v137 = vadd.f32 %v132, %v135
    %v138 = vadd.f32 %v133, %v135
    %v139 = vld [vmem:[#allocation7] sm:$0xff]
    %v140 = vld [vmem:[#allocation7 + $0x8] sm:$0xff]
    %v141 = vld [vmem:[#allocation7 + $0x10] sm:$0xff]
    %v142 = vld [vmem:[#allocation7 + $0x18] sm:$0xff]
    %v143 = vld [vmem:[#allocation7 + $0x20] sm:$0xff]
    %v144 = vld [vmem:[#allocation7 + $0x28] sm:$0xff]
    %v145 = vld [vmem:[#allocation7 + $0x30] sm:$0xff]
    %v146 = vld [vmem:[#allocation7 + $0x38] sm:$0xff]
    %v147 = vld [vmem:[#allocation7 + $0x40] sm:$0xff]
    %v148 = vld [vmem:[#allocation7 + $0x48] sm:$0xff]
    %v149 = vld [vmem:[#allocation7 + $0x50] sm:$0xff]
    %v150 = vld [vmem:[#allocation7 + $0x58] sm:$0xff]
    %v151 = vld [vmem:[#allocation7 + $0x60] sm:$0xff]
    %v152 = vld [vmem:[#allocation7 + $0x68] sm:$0xff]
    %v153 = vld [vmem:[#allocation7 + $0x70] sm:$0xff]
    %v154 = vld [vmem:[#allocation7 + $0x78] sm:$0xff]
    %v155 = vld [vmem:[%s4] sm:$0x1]
    %v157 = vperm.slane %v155, 0
    %159 = vmatpush.msra.mxu0 %v154
    %160 = vmatpush.msra.mxu0 %v153
    %161 = vmatpush.msra.mxu0 %v152
    %162 = vmatpush.msra.mxu0 %v151
    %163 = vmatpush.msra.mxu0 %v150
    %164 = vmatpush.msra.mxu0 %v149
    %165 = vmatpush.msra.mxu0 %v148
    %166 = vmatpush.msra.mxu0 %v147
    %167 = vmatpush.msra.mxu0 %v146
    %168 = vmatpush.msra.mxu0 %v145
    %169 = vmatpush.msra.mxu0 %v144
    %170 = vmatpush.msra.mxu0 %v143
    %171 = vmatpush.msra.mxu0 %v142
    %172 = vmatpush.msra.mxu0 %v141
    %173 = vmatpush.msra.mxu0 %v140
    %174 = vmatpush.msra.mxu0 %v139
    %175 = vmatmul.f32.gmra.mxu0 %v137
    %v176 = vpop.f32.mrf.mxu0
    %v177 = vadd.f32 %v157, %v176
    %178 = vmatmul.f32.gmra.mxu0 %v138
    %v179 = vpop.f32.mrf.mxu0
    %v180 = vadd.f32 %v157, %v179
    %181 = vdwg.mxu0
    %v182 = vmul.f32 %v177, %v177
    %v183 = vmul.f32 %v180, %v180
    %v184 = vmul.f32 %v177, %v182
    %v185 = vmul.f32 %v180, %v183
    %v186 = vmul.f32 %v184, 0.044715
    %v187 = vmul.f32 %v185, 0.044715
    %v188 = vadd.f32 %v177, %v186
    %v189 = vadd.f32 %v180, %v187
    %v190 = vmul.f32 %v188, 0.7978846
    %v191 = vmul.f32 %v189, 0.7978846
    %v192 = vtanh.pop %v190
    %v193 = vtanh.pop %v191
    %v194 = vadd.f32 %v192, 1.0
    %v195 = vadd.f32 %v193, 1.0
    %v196 = vmul.f32 %v194, 0.5
    %v197 = vmul.f32 %v195, 0.5
    %v198 = vmul.f32 %v177, %v196
    %v199 = vmul.f32 %v180, %v197
    %v200 = vld [vmem:[%s5] sm:$0x1]
    %v201 = vld [vmem:[%s6] sm:$0x1]
    %202 = vadd.xlane.f32.xlu0 %v198
    %v203 = vpop.xlane.xlu0 %202
    %204 = vadd.xlane.f32.xlu0 %v199
    %v205 = vpop.xlane.xlu0 %204
    %v206 = vmul.f32 %v203, %v86
    %v207 = vmul.f32 %v205, %v86
    %v208 = vmul.f32 %v198, %v198
    %v209 = vmul.f32 %v199, %v199
    %210 = vadd.xlane.f32.xlu0 %v208
    %v211 = vpop.xlane.xlu0 %210
    %212 = vadd.xlane.f32.xlu0 %v209
    %v213 = vpop.xlane.xlu0 %212
    %v214 = vmul.f32 %v211, %v86
    %v215 = vmul.f32 %v213, %v86
    %v216 = vmul.f32 %v206, %v206
    %v217 = vmul.f32 %v207, %v207
    %v218 = vsub.f32 %v214, %v216
    %v219 = vsub.f32 %v215, %v217
    %v220 = vmax.f32 %v218, 0.0
    %v221 = vmax.f32 %v219, 0.0
    %v222 = vsub.f32 %v198, %v206
    %v223 = vsub.f32 %v199, %v207
    %v224 = vadd.f32 %v220, 1e-05
    %v225 = vadd.f32 %v221, 1e-05
    %v226 = vrsqrt.pop %v224
    %v227 = vmul.f32 %v226, %v224
    %v228 = vmul.f32 %v227, %v226
    %v229 = vmul.f32 0.5, %v228
    %v230 = vsub.f32 1.5, %v229
    %v231 = vmul.f32 %v226, %v230
    %vm232 = vweird.f32 %v224
    %vm233 = vweird.f32 %v226
    %vm234 = vmor %vm232, %vm233
    %v235 = vsel %vm234, %v226, %v231
    %v236 = vrsqrt.pop %v225
    %v237 = vmul.f32 %v236, %v225
    %v238 = vmul.f32 %v237, %v236
    %v239 = vmul.f32 0.5, %v238
    %v240 = vsub.f32 1.5, %v239
    %v241 = vmul.f32 %v236, %v240
    %vm242 = vweird.f32 %v225
    %vm243 = vweird.f32 %v236
    %vm244 = vmor %vm242, %vm243
    %v245 = vsel %vm244, %v236, %v241
    %v246 = vmul.f32 %v222, %v235
    %v247 = vmul.f32 %v223, %v245
    %v249 = vperm.slane %v200, 0
    %v251 = vmul.f32 %v246, %v249
    %v252 = vmul.f32 %v247, %v249
    %v254 = vperm.slane %v201, 0
    %v256 = vadd.f32 %v251, %v254
    %v257 = vadd.f32 %v252, %v254
    %258 = vst [vmem:[#allocation8] sm:$0xff] %v256
    %259 = vst [vmem:[#allocation8 + $0x8] sm:$0xff] %v257
    // Predicated region
    $region42: #{tpu_custom_call.1} parent=1 // pred_check
      _
    $region43: #{tpu_custom_call.1} parent=1 // pred_check_branch
      %261 = sbr.rel (0) target = $region45
    $region44: #{tpu_custom_call.1} parent=1 // pred_region
      %263 = vsyncadd [#allocation4], 0
      %s264 = sshll.u32 [#allocation8], 4
      %s265 = int_to_ptr.vmem [resolvable:$true] %s264
      %s266 = sshll.u32 %s7, 4
      %s267 = int_to_ptr.hbm [resolvable:$true] %s266
      %272 = dma.vmem_to_hbm [thread:$0]  %s265, 256, %s267, [#allocation4], 128, 128, 8
    $region45: #{tpu_custom_call.1} parent=1 // pred_fallthru
      _
    // Predicated region
    $region46: #{tpu_custom_call.1} parent=1 // pred_check
      _
    $region47: #{tpu_custom_call.1} parent=1 // pred_check_branch
      %274 = sbr.rel (0) target = $region49
    $region48: #{tpu_custom_call.1} parent=1 // pred_region
      %276 = dma.done [#allocation4], 256
    $region49: #{tpu_custom_call.1} parent=1 // pred_fallthru
      _
    %277 = vsyncpa [#allocation3], 1
    %278 = vsyncpa [#allocation6], 1
    %279 = vsyncpa [#allocation4], 1

</llo_original>
